<compile_context>
chip_gen: v7x
topology: tpu7x:2x2x1
jax: 0.10.0
libtpu: 0.0.40
codegen_flags: <defaults>
</compile_context>

<pallas_src>
import jax
import jax.numpy as jnp
import numpy as np
from jax.experimental import pallas as pl
from jax.experimental.pallas import tpu as pltpu

_LANES = 48  # 3 branches x 16 hidden attention units


# --------------------------------------------------------------------------- #
# Kernel
# --------------------------------------------------------------------------- #
def attention_kernel(zt_ref, zf_ref, zc_ref,
                     wt_ref, wf_ref, wc_ref, b_ref, qbd_ref,
                     z_out_ref, a_out_ref):
    # Keep the big row tiles in their native dtype for the MXU (bf16 stays bf16).
    zt = zt_ref[...]
    zf = zf_ref[...]
    zc = zc_ref[...]

    # Lane-packed pre-activation: each W_k is stored lane-padded to (nhid, 48)
    # with its 16 columns in its own lane slot, so the three MXU matmuls
    # accumulate directly into one (block_n, 48) slab -- no in-kernel concat,
    # and ONE tanh instead of three (3x fewer EUP vreg ops).
    s = (jnp.dot(zt, wt_ref[...], preferred_element_type=jnp.float32)
         + jnp.dot(zf, wf_ref[...], preferred_element_type=jnp.float32)
         + jnp.dot(zc, wc_ref[...], preferred_element_type=jnp.float32)
         + b_ref[...])                       # (block_n, 48), f32
    h = jnp.tanh(s)                          # single EUP tanh over 48 lanes

    # q projection folded onto the (otherwise idle) MXU via a block-diagonal
    # (48, 3) matrix: e[:, k] = <h_k, q>.  Gives a packed (block_n, 3) `e`.
    e = jnp.dot(h, qbd_ref[...], preferred_element_type=jnp.float32)

    # Softmax over the 3 branches: one max, ONE exp, one sum, exact divide
    # (exact normalization -- rows of `a` sum to 1, and this was the
    # correctness fix vs. the approximate EUP reciprocal).
    m = jnp.max(e, axis=-1, keepdims=True)
    p = jnp.exp(e - m)
    a = p / jnp.sum(p, axis=-1, keepdims=True)          # (block_n, 3), f32

    # Single packed store for a (one vst per 8 rows instead of three).
    a_out_ref[...] = a.astype(a_out_ref.dtype)

    # z = a_t*z_t + a_f*z_f + a_c*z_c, accumulated in f32, cast once at store.
    z = (a[:, 0:1] * zt.astype(jnp.float32)
         + a[:, 1:2] * zf.astype(jnp.float32)
         + a[:, 2:3] * zc.astype(jnp.float32))
    z_out_ref[...] = z.astype(z_out_ref.dtype)


# --------------------------------------------------------------------------- #
# Wrapper / tiling
# --------------------------------------------------------------------------- #
def _vmem_capacity_bytes():
    # Generation-aware VMEM capacity (v5e/v6e: 128 MiB, v7x: 64 MiB).  Falls
    # back to a conservative 64 MiB if the query is unavailable (e.g. under
    # the interpreter), which is safe on every generation.
    try:
        return int(pltpu.get_tpu_info().vmem_capacity_bytes)
    except Exception:
        return 64 << 20


def _per_row_vmem_bytes(nhid, itemsize):
    # Bytes of VMEM needed per row of block_n:
    #   double-buffered row tiles (3 inputs + 1 output), double-buffered a
    #   tile, the f32 (block_n, 48) pre-activation + small softmax
    #   intermediates, and headroom for the f32 weighted-sum temporaries.
    return (8 * nhid * itemsize        # 2 bufs x (3 in + 1 out)
            + 2 * 3 * 4                # 2 bufs x a_out tile
            + (_LANES + 16) * 4        # s/h slab + e/p/a intermediates
            + 2 * nhid * 4)            # f32 weighted-sum temporaries / slack


def _default_block_n(n, nhid, itemsize, vmem_cap):
    # Largest tile that keeps the double-buffered working set inside ~70% of
    # VMEM (minus slack).  Multi-MiB tiles amortize the ~0.35us/step pipeline
    # overhead; no artificial row cap.
    budget = int(0.70 * vmem_cap) - (4 << 20)
    bn = max(8, budget // _per_row_vmem_bytes(nhid, itemsize))
    if bn >= n:
        return n                       # single block; full-dim block is legal
    return max(8, (bn // 8) * 8)       # (8,128) sublane constraint


def _pack_params(params, nhid):
    """Pack the natural (W_k, b_k, q) params into the kernel layout.

    These are O(nhid*48) host-side ops (done once per call), negligible next
    to the O(N*nhid) HBM traffic of the kernel itself.
    """
    wt, bt, wf, bf, wc, bc, q = params
    f32 = jnp.float32
    wt_p = jnp.zeros((nhid, _LANES), f32).at[:, 0:16].set(wt.astype(f32))
    wf_p = jnp.zeros((nhid, _LANES), f32).at[:, 16:32].set(wf.astype(f32))
    wc_p = jnp.zeros((nhid, _LANES), f32).at[:, 32:48].set(wc.astype(f32))
    b_cat = jnp.concatenate([bt, bf, bc], axis=-1).astype(f32)     # (1, 48)
    q_vec = q.reshape(-1).astype(f32)                              # (16,)
    q_bd = jnp.zeros((_LANES, 3), f32)
    q_bd = q_bd.at[0:16, 0].set(q_vec)
    q_bd = q_bd.at[16:32, 1].set(q_vec)
    q_bd = q_bd.at[32:48, 2].set(q_vec)
    return wt_p, wf_p, wc_p, b_cat, q_bd


def attention_forward(z_t, z_f, z_c, params, *, block_n=None):
    n, nhid = z_t.shape
    itemsize = jnp.dtype(z_t.dtype).itemsize
    vmem_cap = _vmem_capacity_bytes()

    if block_n is None:
        block_n = _default_block_n(n, nhid, itemsize, vmem_cap)
    else:
        block_n = int(block_n)
        block_n = n if block_n >= n else max(8, (block_n // 8) * 8)

    wt_p, wf_p, wc_p, b_cat, q_bd = _pack_params(params, nhid)

    # No host-side padding / output slicing: Pallas handles the ragged final
    # row block (garbage reads only affect rows whose writes are masked; all
    # kernel math is row-wise, so valid rows are unaffected).
    grid = (pl.cdiv(n, block_n),)

    # Explicit VMEM budget (mandatory on v5e whose scoped default is 16 MiB).
    weight_bytes = 2 * 4 * (3 * nhid * _LANES + _LANES + _LANES * 3)
    vmem_bytes = (block_n * _per_row_vmem_bytes(nhid, itemsize)
                  + weight_bytes + (8 << 20))              # compiler slack
    vmem_bytes = int(min(max(vmem_bytes, 32 << 20), vmem_cap))

    row_spec = pl.BlockSpec((block_n, nhid), lambda i: (i, 0))
    w_spec = pl.BlockSpec((nhid, _LANES), lambda i: (0, 0))
    b_spec = pl.BlockSpec((1, _LANES), lambda i: (0, 0))
    qbd_spec = pl.BlockSpec((_LANES, 3), lambda i: (0, 0))
    a_spec = pl.BlockSpec((block_n, 3), lambda i: (i, 0))

    # TODO(synk): on v7x, verify both TensorCores pick up the row axis; if one
    # idles under ("parallel",), switch to (pltpu.CORE_PARALLEL,).
    z_out, a_out = pl.pallas_call(
        attention_kernel,
        out_shape=(jax.ShapeDtypeStruct((n, nhid), z_t.dtype),
                   jax.ShapeDtypeStruct((n, 3), jnp.float32)),
        grid_spec=pltpu.PrefetchScalarGridSpec(
            num_scalar_prefetch=0,
            grid=grid,
            in_specs=[row_spec, row_spec, row_spec,
                      w_spec, w_spec, w_spec, b_spec, qbd_spec],
            out_specs=[row_spec, a_spec],
        ),
        compiler_params=pltpu.CompilerParams(
            dimension_semantics=("parallel",),
            vmem_limit_bytes=vmem_bytes),
    )(z_t, z_f, z_c, wt_p, wf_p, wc_p, b_cat, q_bd)

    return z_out, a_out


# --------------------------------------------------------------------------- #
# Reference + test harness
# --------------------------------------------------------------------------- #
def reference_forward(z_t, z_f, z_c, params):
    wt, bt, wf, bf, wc, bc, q = params
    et = jnp.tanh(z_t @ wt + bt) @ q.T            # q: (1,16) -> (N,1)
    ef = jnp.tanh(z_f @ wf + bf) @ q.T
    ec = jnp.tanh(z_c @ wc + bc) @ q.T
    e = jnp.concatenate([et, ef, ec], axis=-1)    # (N, 3)
    a = jax.nn.softmax(e, axis=1)
    z = a[:, 0:1] * z_t + a[:, 1:2] * z_f + a[:, 2:3] * z_c
    return z, a


def init_params(key, nhid):
    ks = jax.random.split(key, 7)
    bound_w = 1.0 / np.sqrt(nhid)
    bound_q = 1.0 / np.sqrt(16)
    # Natural layout: W_k stored transposed as (nhid, 16) so y = x @ W + b;
    # q stored as a (1, 16) row.
    wt = jax.random.uniform(ks[0], (nhid, 16), jnp.float32, -bound_w, bound_w)
    bt = jax.random.uniform(ks[1], (1, 16), jnp.float32, -bound_w, bound_w)
    wf = jax.random.uniform(ks[2], (nhid, 16), jnp.float32, -bound_w, bound_w)
    bf = jax.random.uniform(ks[3], (1, 16), jnp.float32, -bound_w, bound_w)
    wc = jax.random.uniform(ks[4], (nhid, 16), jnp.float32, -bound_w, bound_w)
    bc = jax.random.uniform(ks[5], (1, 16), jnp.float32, -bound_w, bound_w)
    q = jax.random.uniform(ks[6], (1, 16), jnp.float32, -bound_q, bound_q)
    return (wt, bt, wf, bf, wc, bc, q)


if __name__ == "__main__":
    # Small, deterministic shapes: N=20 nodes, nhid=32 hidden features.
    N, nhid = 20, 32
    key = jax.random.PRNGKey(0)
    k_zt, k_zf, k_zc, k_p = jax.random.split(key, 4)
    z_t = jax.random.normal(k_zt, (N, nhid), jnp.float32)
    z_f = jax.random.normal(k_zf, (N, nhid), jnp.float32)
    z_c = jax.random.normal(k_zc, (N, nhid), jnp.float32)
    params = init_params(k_p, nhid)

    # Default tiling (single full-extent block here since N is tiny).
    z_out, a_out = attention_forward(z_t, z_f, z_c, params)
    # Explicit small tile -> multi-step pipelined grid + ragged final block.
    z_out2, a_out2 = attention_forward(z_t, z_f, z_c, params, block_n=8)
    jax.block_until_ready((z_out, a_out, z_out2, a_out2))

    z_ref, a_ref = reference_forward(z_t, z_f, z_c, params)
    for zo, ao in ((z_out, a_out), (z_out2, a_out2)):
        np.testing.assert_allclose(np.asarray(zo), np.asarray(z_ref),
                                   rtol=1e-3, atol=1e-3)
        np.testing.assert_allclose(np.asarray(ao), np.asarray(a_ref),
                                   rtol=1e-3, atol=1e-3)
        # Exact softmax normalization: each row of `a` sums to 1.
        np.testing.assert_allclose(np.asarray(ao).sum(axis=1),
                                   np.ones(N), rtol=1e-6, atol=1e-6)
    print("KERNEL_OK")
</pallas_src>

<mosaic_0001>
module attributes {stable_mosaic.version = 11 : i64} {
  func.func @attention_kernel(%arg0: i32, %arg1: memref<20x32xf32, #tpu.memory_space<vmem>>, %arg2: memref<20x32xf32, #tpu.memory_space<vmem>>, %arg3: memref<20x32xf32, #tpu.memory_space<vmem>>, %arg4: memref<32x48xf32, #tpu.memory_space<vmem>>, %arg5: memref<32x48xf32, #tpu.memory_space<vmem>>, %arg6: memref<32x48xf32, #tpu.memory_space<vmem>>, %arg7: memref<1x48xf32, #tpu.memory_space<vmem>>, %arg8: memref<48x3xf32, #tpu.memory_space<vmem>>, %arg9: memref<20x32xf32, #tpu.memory_space<vmem>>, %arg10: memref<20x3xf32, #tpu.memory_space<vmem>>) attributes {dimension_semantics = [#tpu.dimension_semantics<parallel>], iteration_bounds = array<i64: 1>, scalar_prefetch = 0 : i64, scratch_operands = 0 : i64, tpu.core_type = #tpu.core_type<tc>, window_params = [{transform_indices = @transform_0, window_bounds = array<i64: 20, 32>}, {transform_indices = @transform_1, window_bounds = array<i64: 20, 32>}, {transform_indices = @transform_2, window_bounds = array<i64: 20, 32>}, {pipeline_mode = #tpu.pipeline_mode<synchronous>, transform_indices = @transform_3, window_bounds = array<i64: 32, 48>}, {pipeline_mode = #tpu.pipeline_mode<synchronous>, transform_indices = @transform_4, window_bounds = array<i64: 32, 48>}, {pipeline_mode = #tpu.pipeline_mode<synchronous>, transform_indices = @transform_5, window_bounds = array<i64: 32, 48>}, {pipeline_mode = #tpu.pipeline_mode<synchronous>, transform_indices = @transform_6, window_bounds = array<i64: 1, 48>}, {pipeline_mode = #tpu.pipeline_mode<synchronous>, transform_indices = @transform_7, window_bounds = array<i64: 48, 3>}, {transform_indices = @transform_8, window_bounds = array<i64: 20, 32>}, {transform_indices = @transform_9, window_bounds = array<i64: 20, 3>}]} {
    %c0 = arith.constant 0 : index
    %c0_0 = arith.constant 0 : index
    %0 = vector.load %arg1[%c0, %c0_0] : memref<20x32xf32, #tpu.memory_space<vmem>>, vector<20x32xf32>
    %c0_1 = arith.constant 0 : index
    %c0_2 = arith.constant 0 : index
    %1 = vector.load %arg2[%c0_1, %c0_2] : memref<20x32xf32, #tpu.memory_space<vmem>>, vector<20x32xf32>
    %c0_3 = arith.constant 0 : index
    %c0_4 = arith.constant 0 : index
    %2 = vector.load %arg3[%c0_3, %c0_4] : memref<20x32xf32, #tpu.memory_space<vmem>>, vector<20x32xf32>
    %c0_5 = arith.constant 0 : index
    %c0_6 = arith.constant 0 : index
    %3 = vector.load %arg4[%c0_5, %c0_6] : memref<32x48xf32, #tpu.memory_space<vmem>>, vector<32x48xf32>
    %cst = arith.constant dense<0.000000e+00> : vector<20x48xf32>
    %4 = tpu.matmul %0, %3, %cst {dimension_numbers = #tpu.dot_dimension_numbers<[1], [0], [0], [1], [0, 0, 1, 1], [], []>} : vector<20x32xf32>, vector<32x48xf32>, vector<20x48xf32> -> vector<20x48xf32>
    %c0_7 = arith.constant 0 : index
    %c0_8 = arith.constant 0 : index
    %5 = vector.load %arg5[%c0_7, %c0_8] : memref<32x48xf32, #tpu.memory_space<vmem>>, vector<32x48xf32>
    %cst_9 = arith.constant dense<0.000000e+00> : vector<20x48xf32>
    %6 = tpu.matmul %1, %5, %cst_9 {dimension_numbers = #tpu.dot_dimension_numbers<[1], [0], [0], [1], [0, 0, 1, 1], [], []>} : vector<20x32xf32>, vector<32x48xf32>, vector<20x48xf32> -> vector<20x48xf32>
    %7 = arith.addf %4, %6 : vector<20x48xf32>
    %c0_10 = arith.constant 0 : index
    %c0_11 = arith.constant 0 : index
    %8 = vector.load %arg6[%c0_10, %c0_11] : memref<32x48xf32, #tpu.memory_space<vmem>>, vector<32x48xf32>
    %cst_12 = arith.constant dense<0.000000e+00> : vector<20x48xf32>
    %9 = tpu.matmul %2, %8, %cst_12 {dimension_numbers = #tpu.dot_dimension_numbers<[1], [0], [0], [1], [0, 0, 1, 1], [], []>} : vector<20x32xf32>, vector<32x48xf32>, vector<20x48xf32> -> vector<20x48xf32>
    %10 = arith.addf %7, %9 : vector<20x48xf32>
    %c0_13 = arith.constant 0 : index
    %c0_14 = arith.constant 0 : index
    %11 = vector.load %arg7[%c0_13, %c0_14] : memref<1x48xf32, #tpu.memory_space<vmem>>, vector<1x48xf32>
    %12 = vector.broadcast %11 : vector<1x48xf32> to vector<20x48xf32>
    %13 = arith.addf %10, %12 : vector<20x48xf32>
    %14 = math.tanh %13 : vector<20x48xf32>
    %c0_15 = arith.constant 0 : index
    %c0_16 = arith.constant 0 : index
    %15 = vector.load %arg8[%c0_15, %c0_16] : memref<48x3xf32, #tpu.memory_space<vmem>>, vector<48x3xf32>
    %cst_17 = arith.constant dense<0.000000e+00> : vector<20x3xf32>
    %16 = tpu.matmul %14, %15, %cst_17 {dimension_numbers = #tpu.dot_dimension_numbers<[1], [0], [0], [1], [0, 0, 1, 1], [], []>} : vector<20x48xf32>, vector<48x3xf32>, vector<20x3xf32> -> vector<20x3xf32>
    %cst_18 = arith.constant dense<0xFF800000> : vector<20xf32>
    %17 = vector.multi_reduction <maximumf>, %16, %cst_18 [1] : vector<20x3xf32> to vector<20xf32>
    %18 = vector.shape_cast %17 : vector<20xf32> to vector<20x1xf32>
    %19 = vector.broadcast %18 : vector<20x1xf32> to vector<20x3xf32>
    %20 = arith.subf %16, %19 : vector<20x3xf32>
    %21 = math.exp %20 : vector<20x3xf32>
    %cst_19 = arith.constant dense<0.000000e+00> : vector<20xf32>
    %22 = vector.multi_reduction <add>, %21, %cst_19 [1] : vector<20x3xf32> to vector<20xf32>
    %23 = vector.shape_cast %22 : vector<20xf32> to vector<20x1xf32>
    %24 = vector.broadcast %23 : vector<20x1xf32> to vector<20x3xf32>
    %25 = arith.divf %21, %24 : vector<20x3xf32>
    %c0_20 = arith.constant 0 : index
    %c0_21 = arith.constant 0 : index
    %26 = vector.load %arg10[%c0_20, %c0_21] : memref<20x3xf32, #tpu.memory_space<vmem>>, vector<20x3xf32>
    tpu.vector_store %arg10[%c0_20, %c0_21], %25 {strides = array<i32>} : memref<20x3xf32, #tpu.memory_space<vmem>>, vector<20x3xf32>,
    %27 = vector.extract_strided_slice %25 {offsets = [0, 0], sizes = [20, 1], strides = [1, 1]} : vector<20x3xf32> to vector<20x1xf32>
    %28 = vector.broadcast %27 : vector<20x1xf32> to vector<20x32xf32>
    %29 = arith.mulf %28, %0 : vector<20x32xf32>
    %30 = vector.extract_strided_slice %25 {offsets = [0, 1], sizes = [20, 1], strides = [1, 1]} : vector<20x3xf32> to vector<20x1xf32>
    %31 = vector.broadcast %30 : vector<20x1xf32> to vector<20x32xf32>
    %32 = arith.mulf %31, %1 : vector<20x32xf32>
    %33 = arith.addf %29, %32 : vector<20x32xf32>
    %34 = vector.extract_strided_slice %25 {offsets = [0, 2], sizes = [20, 1], strides = [1, 1]} : vector<20x3xf32> to vector<20x1xf32>
    %35 = vector.broadcast %34 : vector<20x1xf32> to vector<20x32xf32>
    %36 = arith.mulf %35, %2 : vector<20x32xf32>
    %37 = arith.addf %33, %36 : vector<20x32xf32>
    %c0_22 = arith.constant 0 : index
    %c0_23 = arith.constant 0 : index
    %38 = vector.load %arg9[%c0_22, %c0_23] : memref<20x32xf32, #tpu.memory_space<vmem>>, vector<20x32xf32>
    tpu.vector_store %arg9[%c0_22, %c0_23], %37 {strides = array<i32>} : memref<20x32xf32, #tpu.memory_space<vmem>>, vector<20x32xf32>,
    return
  }
  func.func @transform_0(%arg0: i32) -> (i32, i32) {
    %c0_i32 = arith.constant 0 : i32
    %c0_i32_0 = arith.constant 0 : i32
    return %arg0, %c0_i32 : i32, i32
  }
  func.func @transform_1(%arg0: i32) -> (i32, i32) {
    %c0_i32 = arith.constant 0 : i32
    %c0_i32_0 = arith.constant 0 : i32
    return %arg0, %c0_i32 : i32, i32
  }
  func.func @transform_2(%arg0: i32) -> (i32, i32) {
    %c0_i32 = arith.constant 0 : i32
    %c0_i32_0 = arith.constant 0 : i32
    return %arg0, %c0_i32 : i32, i32
  }
  func.func @transform_3(%arg0: i32) -> (i32, i32) {
    %c0_i32 = arith.constant 0 : i32
    %c0_i32_0 = arith.constant 0 : i32
    %c0_i32_1 = arith.constant 0 : i32
    return %c0_i32, %c0_i32_0 : i32, i32
  }
  func.func @transform_4(%arg0: i32) -> (i32, i32) {
    %c0_i32 = arith.constant 0 : i32
    %c0_i32_0 = arith.constant 0 : i32
    %c0_i32_1 = arith.constant 0 : i32
    return %c0_i32, %c0_i32_0 : i32, i32
  }
  func.func @transform_5(%arg0: i32) -> (i32, i32) {
    %c0_i32 = arith.constant 0 : i32
    %c0_i32_0 = arith.constant 0 : i32
    %c0_i32_1 = arith.constant 0 : i32
    return %c0_i32, %c0_i32_0 : i32, i32
  }
  func.func @transform_6(%arg0: i32) -> (i32, i32) {
    %c0_i32 = arith.constant 0 : i32
    %c0_i32_0 = arith.constant 0 : i32
    %c0_i32_1 = arith.constant 0 : i32
    return %c0_i32, %c0_i32_0 : i32, i32
  }
  func.func @transform_7(%arg0: i32) -> (i32, i32) {
    %c0_i32 = arith.constant 0 : i32
    %c0_i32_0 = arith.constant 0 : i32
    %c0_i32_1 = arith.constant 0 : i32
    return %c0_i32, %c0_i32_0 : i32, i32
  }
  func.func @transform_8(%arg0: i32) -> (i32, i32) {
    %c0_i32 = arith.constant 0 : i32
    %c0_i32_0 = arith.constant 0 : i32
    return %arg0, %c0_i32 : i32, i32
  }
  func.func @transform_9(%arg0: i32) -> (i32, i32) {
    %c0_i32 = arith.constant 0 : i32
    %c0_i32_0 = arith.constant 0 : i32
    return %arg0, %c0_i32 : i32, i32
  }
}

</mosaic_0001>

<llo_original>
// kernel: tpu_custom_call.1
$region0: #{tpu_custom_call.1}
  #allocation0 [shape = 'u32[]', space=smem, size = 0x4, offset = 0x4, fixed_abs, tag = 'smem constant byte address 0x4 - core index']
  #allocation1 [shape = 'u32[144,128]{1,0:T(1,128)}', space=vmem, size = 0x12000, scoped, tag = 'internal scratch']
  %s0 = inlined_call_operand.hbm [shape: f32[20,32], index: 0, kind: input, shape index: {}]
  %s1 = inlined_call_operand.hbm [shape: f32[20,32], index: 1, kind: input, shape index: {}]
  %s2 = inlined_call_operand.hbm [shape: f32[20,32], index: 2, kind: input, shape index: {}]
  %s3 = inlined_call_operand.vmem [shape: f32[32,48], index: 3, kind: input, shape index: {}]
  %s4 = inlined_call_operand.vmem [shape: f32[32,48], index: 4, kind: input, shape index: {}]
  %s5 = inlined_call_operand.hbm [shape: f32[32,48], index: 5, kind: input, shape index: {}]
  %s6 = inlined_call_operand.vmem [shape: f32[1,48], index: 6, kind: input, shape index: {}]
  %s7 = inlined_call_operand.vmem [shape: f32[48,3], index: 7, kind: input, shape index: {}]
  %s8 = inlined_call_operand.hbm [shape: f32[20,32], index: 8, kind: output, shape index: {0}]
  %s9 = inlined_call_operand.vmem [shape: f32[20,3], index: 9, kind: output, shape index: {1}]
  %10 = xla_tuple %s8, %s9
  %s11 = sld [smem:[#allocation0]]
  $region66: #{tpu_custom_call.1} parent=0
    _
  %s13 = ssub.s32 1, %s11
  %s14 = scalar_select 0, %s13, %s11
  $region1: #{tpu_custom_call.1} parent=0
    #allocation2 [shape = 'u8[12288]{0}', space=vmem, size = 0x3000, scoped, tag = 'input window, operand 0, single buffered']
    #allocation3 [shape = 's32[1]{0}', space=sflag, size = 0x4, scoped, tag = 'scoped memory for tpu_custom_call.1']
    #allocation4 [shape = 's32[1]{0}', space=sflag, size = 0x4, scoped, tag = 'scoped memory for tpu_custom_call.1']
    #allocation5 [shape = 'u8[12288]{0}', space=vmem, size = 0x3000, scoped, tag = 'input window, operand 1, single buffered']
    #allocation6 [shape = 's32[1]{0}', space=sflag, size = 0x4, scoped, tag = 'scoped memory for tpu_custom_call.1']
    #allocation7 [shape = 'u8[12288]{0}', space=vmem, size = 0x3000, scoped, tag = 'input window, operand 2, single buffered']
    #allocation8 [shape = 'u8[16384]{0}', space=vmem, size = 0x4000, scoped, tag = 'input window, operand 5, single buffered']
    #allocation9 [shape = 's32[1]{0}', space=sflag, size = 0x4, scoped, tag = 'scoped memory for tpu_custom_call.1']
    #allocation10 [shape = 'u8[12288]{0}', space=vmem, size = 0x3000, scoped, tag = 'output window, operand 0, single buffered']
    %15 = vsyncpa [#allocation3], 0
    %16 = vsyncpa [#allocation6], 0
    %17 = vsyncpa [#allocation9], 0
    %18 = vsyncpa [#allocation4], 0
    // Predicated region
    $region2: #{tpu_custom_call.1} parent=1 // pred_check
      _
    $region3: #{tpu_custom_call.1} parent=1 // pred_check_branch
      %20 = sbr.rel (0) target = $region5
    $region4: #{tpu_custom_call.1} parent=1 // pred_region
      %s22 = ssub.s32 384, 384
      %23 = vsyncadd [#allocation3], %s22
      %s24 = sshll.u32 [#allocation2], 4
      %s25 = int_to_ptr.vmem [resolvable:$true] %s24
      %30 = dma.hbm_to_vmem [thread:$0]  %s0, 384, %s25, [#allocation3], 128, 128, 8
    $region5: #{tpu_custom_call.1} parent=1 // pred_fallthru
      _
    // Predicated region
    $region6: #{tpu_custom_call.1} parent=1 // pred_check
      _
    $region7: #{tpu_custom_call.1} parent=1 // pred_check_branch
      %32 = sbr.rel (0) target = $region9
    $region8: #{tpu_custom_call.1} parent=1 // pred_region
      %s34 = ssub.s32 384, 384
      %35 = vsyncadd [#allocation6], %s34
      %s36 = sshll.u32 [#allocation5], 4
      %s37 = int_to_ptr.vmem [resolvable:$true] %s36
      %42 = dma.hbm_to_vmem [thread:$0]  %s1, 384, %s37, [#allocation6], 128, 128, 8
    $region9: #{tpu_custom_call.1} parent=1 // pred_fallthru
      _
    // Predicated region
    $region10: #{tpu_custom_call.1} parent=1 // pred_check
      _
    $region11: #{tpu_custom_call.1} parent=1 // pred_check_branch
      %44 = sbr.rel (0) target = $region13
    $region12: #{tpu_custom_call.1} parent=1 // pred_region
      %s46 = ssub.s32 384, 384
      %47 = vsyncadd [#allocation6], %s46
      %s48 = sshll.u32 [#allocation7], 4
      %s49 = int_to_ptr.vmem [resolvable:$true] %s48
      %54 = dma.hbm_to_vmem [thread:$0]  %s2, 384, %s49, [#allocation6], 128, 128, 8
    $region13: #{tpu_custom_call.1} parent=1 // pred_fallthru
      _
    // Predicated region
    $region14: #{tpu_custom_call.1} parent=1 // pred_check
      _
    $region15: #{tpu_custom_call.1} parent=1 // pred_check_branch
      %56 = sbr.rel (0) target = $region17
    $region16: #{tpu_custom_call.1} parent=1 // pred_region
      _
    $region17: #{tpu_custom_call.1} parent=1 // pred_fallthru
      _
    // Predicated region
    $region18: #{tpu_custom_call.1} parent=1 // pred_check
      _
    $region19: #{tpu_custom_call.1} parent=1 // pred_check_branch
      %58 = sbr.rel (0) target = $region21
    $region20: #{tpu_custom_call.1} parent=1 // pred_region
      _
    $region21: #{tpu_custom_call.1} parent=1 // pred_fallthru
      _
    // Predicated region
    $region22: #{tpu_custom_call.1} parent=1 // pred_check
      _
    $region23: #{tpu_custom_call.1} parent=1 // pred_check_branch
      %60 = sbr.rel (0) target = $region25
    $region24: #{tpu_custom_call.1} parent=1 // pred_region
      %s62 = ssub.s32 512, 512
      %63 = vsyncadd [#allocation9], %s62
      %s64 = sshll.u32 [#allocation8], 4
      %s65 = int_to_ptr.vmem [resolvable:$true] %s64
      %70 = dma.hbm_to_vmem [thread:$0]  %s5, 512, %s65, [#allocation9], 128, 128, 8
    $region25: #{tpu_custom_call.1} parent=1 // pred_fallthru
      _
    // Predicated region
    $region26: #{tpu_custom_call.1} parent=1 // pred_check
      _
    $region27: #{tpu_custom_call.1} parent=1 // pred_check_branch
      %72 = sbr.rel (0) target = $region29
    $region28: #{tpu_custom_call.1} parent=1 // pred_region
      _
    $region29: #{tpu_custom_call.1} parent=1 // pred_fallthru
      _
    // Predicated region
    $region30: #{tpu_custom_call.1} parent=1 // pred_check
      _
    $region31: #{tpu_custom_call.1} parent=1 // pred_check_branch
      %74 = sbr.rel (0) target = $region33
    $region32: #{tpu_custom_call.1} parent=1 // pred_region
      _
    $region33: #{tpu_custom_call.1} parent=1 // pred_fallthru
      _
    // Predicated region
    $region34: #{tpu_custom_call.1} parent=1 // pred_check
      _
    $region35: #{tpu_custom_call.1} parent=1 // pred_check_branch
      %76 = sbr.rel (0) target = $region37
    $region36: #{tpu_custom_call.1} parent=1 // pred_region
      %77 = dma.done [#allocation3], 384
    $region37: #{tpu_custom_call.1} parent=1 // pred_fallthru
      _
    // Predicated region
    $region38: #{tpu_custom_call.1} parent=1 // pred_check
      _
    $region39: #{tpu_custom_call.1} parent=1 // pred_check_branch
      %79 = sbr.rel (0) target = $region41
    $region40: #{tpu_custom_call.1} parent=1 // pred_region
      %80 = dma.done [#allocation6], 384
    $region41: #{tpu_custom_call.1} parent=1 // pred_fallthru
      _
    // Predicated region
    $region42: #{tpu_custom_call.1} parent=1 // pred_check
      _
    $region43: #{tpu_custom_call.1} parent=1 // pred_check_branch
      %82 = sbr.rel (0) target = $region45
    $region44: #{tpu_custom_call.1} parent=1 // pred_region
      %83 = dma.done [#allocation6], 384
    $region45: #{tpu_custom_call.1} parent=1 // pred_fallthru
      _
    // Predicated region
    $region46: #{tpu_custom_call.1} parent=1 // pred_check
      _
    $region47: #{tpu_custom_call.1} parent=1 // pred_check_branch
      %85 = sbr.rel (0) target = $region49
    $region48: #{tpu_custom_call.1} parent=1 // pred_region
      %86 = dma.done [#allocation9], 512
    $region49: #{tpu_custom_call.1} parent=1 // pred_fallthru
      _
    %v87 = vld [vmem:[#allocation2] sm:$0xff]
    %v88 = vld [vmem:[#allocation2 + $0x8] sm:$0xff]
    %v89 = vld [vmem:[#allocation2 + $0x10] sm:$0xf]
    %v90 = vld [vmem:[#allocation5] sm:$0xff]
    %v91 = vld [vmem:[#allocation5 + $0x8] sm:$0xff]
    %v92 = vld [vmem:[#allocation5 + $0x10] sm:$0xf]
    %v93 = vld [vmem:[#allocation7] sm:$0xff]
    %v94 = vld [vmem:[#allocation7 + $0x8] sm:$0xff]
    %v95 = vld [vmem:[#allocation7 + $0x10] sm:$0xf]
    %v96 = vld [vmem:[%s3] sm:$0xff]
    %v97 = vld [vmem:[%s3 + $0x8] sm:$0xff]
    %v98 = vld [vmem:[%s3 + $0x10] sm:$0xff]
    %v99 = vld [vmem:[%s3 + $0x18] sm:$0xff]
    %v100 = vld [vmem:[%s4] sm:$0xff]
    %v101 = vld [vmem:[%s4 + $0x8] sm:$0xff]
    %v102 = vld [vmem:[%s4 + $0x10] sm:$0xff]
    %v103 = vld [vmem:[%s4 + $0x18] sm:$0xff]
    %vm104 = vcmask 261120
    %v106 = vsel %vm104, %v90, 0
    %v109 = vsel %vm104, %v91, 0
    %v112 = vsel %vm104, %v92, 0
    %114 = vmatprep.subr.mxu0 0.0
    %115 = vmatpush1.msra.mxu0 %v100
    %116 = vmatprep.subr.mxu0 0.0
    %117 = vmatpush1.msra.mxu0 %v101
    %118 = vmatprep.subr.mxu0 0.0
    %119 = vmatpush1.msra.mxu0 %v102
    %120 = vmatprep.subr.mxu0 0.0
    %121 = vmatpush1.msra.mxu0 %v103
    %122 = vmatprep.subr.mxu0 0.0
    %123 = vmatpush1.msra.mxu0 0.0
    %124 = vmatprep.subr.mxu0 0.0
    %125 = vmatpush1.msra.mxu0 0.0
    %126 = vmatprep.subr.mxu0 0.0
    %127 = vmatpush1.msra.mxu0 0.0
    %128 = vmatprep.subr.mxu0 0.0
    %129 = vmatpush1.msra.mxu0 0.0
    %130 = vmatprep.subr.mxu0 0.0
    %131 = vmatpush1.msra.mxu0 0.0
    %132 = vmatprep.subr.mxu0 0.0
    %133 = vmatpush1.msra.mxu0 0.0
    %134 = vmatprep.subr.mxu0 0.0
    %135 = vmatpush1.msra.mxu0 0.0
    %136 = vmatprep.subr.mxu0 0.0
    %137 = vmatpush1.msra.mxu0 0.0
    %138 = vmatprep.subr.mxu0 0.0
    %139 = vmatpush1.msra.mxu0 0.0
    %140 = vmatprep.subr.mxu0 0.0
    %141 = vmatpush1.msra.mxu0 0.0
    %142 = vmatprep.subr.mxu0 0.0
    %143 = vmatpush1.msra.mxu0 0.0
    %144 = vmatprep.subr.mxu0 0.0
    %145 = vmatpush1.msra.mxu0 0.0
    %146 = vmatprep.subr.mxu0 0.0
    %147 = vmatpush1.msra.mxu0 0.0
    %148 = vmatprep.subr.mxu0 0.0
    %149 = vmatpush1.msra.mxu0 0.0
    %150 = vmatprep.subr.mxu0 0.0
    %151 = vmatpush1.msra.mxu0 0.0
    %152 = vmatprep.subr.mxu0 0.0
    %153 = vmatpush1.msra.mxu0 0.0
    %154 = vmatprep.subr.mxu0 0.0
    %155 = vmatpush1.msra.mxu0 0.0
    %156 = vmatprep.subr.mxu0 0.0
    %157 = vmatpush1.msra.mxu0 0.0
    %158 = vmatprep.subr.mxu0 0.0
    %159 = vmatpush1.msra.mxu0 0.0
    %160 = vmatprep.subr.mxu0 0.0
    %161 = vmatpush1.msra.mxu0 0.0
    %162 = vmatprep.subr.mxu0 0.0
    %163 = vmatpush1.msra.mxu0 0.0
    %164 = vmatprep.subr.mxu0 0.0
    %165 = vmatpush1.msra.mxu0 0.0
    %166 = vmatprep.subr.mxu0 0.0
    %167 = vmatpush1.msra.mxu0 0.0
    %168 = vmatprep.subr.mxu0 0.0
    %169 = vmatpush1.msra.mxu0 0.0
    %170 = vmatprep.subr.mxu0 0.0
    %171 = vmatpush1.msra.mxu0 0.0
    %172 = vmatprep.subr.mxu0 0.0
    %173 = vmatpush1.msra.mxu0 0.0
    %174 = vmatprep.subr.mxu0 0.0
    %175 = vmatpush1.msra.mxu0 0.0
    %176 = vmatprep.subr.mxu0 0.0
    %177 = vmatpush1.msra.mxu0 0.0
    %178 = vmatprep.mubr.f32.mxu0 0.0
    %179 = vmatmul.mubr.f32.gmra.mrb[0].mxu0 %v106
    %v180 = vpop.f32.mrb[0].mxu0
    %v181 = vadd.f32 0.0, %v180
    %v182 = vpop.f32.mrb[0].mxu0
    %183 = vmatprep.mubr.f32.mxu0 0.0
    %184 = vmatmul.mubr.f32.gmra.mrb[0].mxu0 %v109
    %v185 = vpop.f32.mrb[0].mxu0
    %v186 = vadd.f32 0.0, %v185
    %v187 = vpop.f32.mrb[0].mxu0
    %188 = vmatprep.mubr.f32.mxu0 0.0
    %189 = vmatmul.mubr.f32.gmra.mrb[0].mxu0 %v112
    %v190 = vpop.f32.mrb[0].mxu0
    %v191 = vadd.f32 0.0, %v190
    %v192 = vpop.f32.mrb[0].mxu0
    %193 = vdwg.mxu0
    %v195 = vsel %vm104, %v87, 0
    %v198 = vsel %vm104, %v88, 0
    %v201 = vsel %vm104, %v89, 0
    %203 = vmatprep.subr.mxu0 0.0
    %204 = vmatpush1.msra.mxu0 %v96
    %205 = vmatprep.subr.mxu0 0.0
    %206 = vmatpush1.msra.mxu0 %v97
    %207 = vmatprep.subr.mxu0 0.0
    %208 = vmatpush1.msra.mxu0 %v98
    %209 = vmatprep.subr.mxu0 0.0
    %210 = vmatpush1.msra.mxu0 %v99
    %211 = vmatprep.subr.mxu0 0.0
    %212 = vmatpush1.msra.mxu0 0.0
    %213 = vmatprep.subr.mxu0 0.0
    %214 = vmatpush1.msra.mxu0 0.0
    %215 = vmatprep.subr.mxu0 0.0
    %216 = vmatpush1.msra.mxu0 0.0
    %217 = vmatprep.subr.mxu0 0.0
    %218 = vmatpush1.msra.mxu0 0.0
    %219 = vmatprep.subr.mxu0 0.0
    %220 = vmatpush1.msra.mxu0 0.0
    %221 = vmatprep.subr.mxu0 0.0
    %222 = vmatpush1.msra.mxu0 0.0
    %223 = vmatprep.subr.mxu0 0.0
    %224 = vmatpush1.msra.mxu0 0.0
    %225 = vmatprep.subr.mxu0 0.0
    %226 = vmatpush1.msra.mxu0 0.0
    %227 = vmatprep.subr.mxu0 0.0
    %228 = vmatpush1.msra.mxu0 0.0
    %229 = vmatprep.subr.mxu0 0.0
    %230 = vmatpush1.msra.mxu0 0.0
    %231 = vmatprep.subr.mxu0 0.0
    %232 = vmatpush1.msra.mxu0 0.0
    %233 = vmatprep.subr.mxu0 0.0
    %234 = vmatpush1.msra.mxu0 0.0
    %235 = vmatprep.subr.mxu0 0.0
    %236 = vmatpush1.msra.mxu0 0.0
    %237 = vmatprep.subr.mxu0 0.0
    %238 = vmatpush1.msra.mxu0 0.0
    %239 = vmatprep.subr.mxu0 0.0
    %240 = vmatpush1.msra.mxu0 0.0
    %241 = vmatprep.subr.mxu0 0.0
    %242 = vmatpush1.msra.mxu0 0.0
    %243 = vmatprep.subr.mxu0 0.0
    %244 = vmatpush1.msra.mxu0 0.0
    %245 = vmatprep.subr.mxu0 0.0
    %246 = vmatpush1.msra.mxu0 0.0
    %247 = vmatprep.subr.mxu0 0.0
    %248 = vmatpush1.msra.mxu0 0.0
    %249 = vmatprep.subr.mxu0 0.0
    %250 = vmatpush1.msra.mxu0 0.0
    %251 = vmatprep.subr.mxu0 0.0
    %252 = vmatpush1.msra.mxu0 0.0
    %253 = vmatprep.subr.mxu0 0.0
    %254 = vmatpush1.msra.mxu0 0.0
    %255 = vmatprep.subr.mxu0 0.0
    %256 = vmatpush1.msra.mxu0 0.0
    %257 = vmatprep.subr.mxu0 0.0
    %258 = vmatpush1.msra.mxu0 0.0
    %259 = vmatprep.subr.mxu0 0.0
    %260 = vmatpush1.msra.mxu0 0.0
    %261 = vmatprep.subr.mxu0 0.0
    %262 = vmatpush1.msra.mxu0 0.0
    %263 = vmatprep.subr.mxu0 0.0
    %264 = vmatpush1.msra.mxu0 0.0
    %265 = vmatprep.subr.mxu0 0.0
    %266 = vmatpush1.msra.mxu0 0.0
    %267 = vmatprep.mubr.f32.mxu0 0.0
    %268 = vmatmul.mubr.f32.gmra.mrb[0].mxu0 %v195
    %v269 = vpop.f32.mrb[0].mxu0
    %v270 = vadd.f32 %v181, %v269
    %v271 = vpop.f32.mrb[0].mxu0
    %272 = vmatprep.mubr.f32.mxu0 0.0
    %273 = vmatmul.mubr.f32.gmra.mrb[0].mxu0 %v198
    %v274 = vpop.f32.mrb[0].mxu0
    %v275 = vadd.f32 %v186, %v274
    %v276 = vpop.f32.mrb[0].mxu0
    %277 = vmatprep.mubr.f32.mxu0 0.0
    %278 = vmatmul.mubr.f32.gmra.mrb[0].mxu0 %v201
    %v279 = vpop.f32.mrb[0].mxu0
    %v280 = vadd.f32 %v191, %v279
    %v281 = vpop.f32.mrb[0].mxu0
    %282 = vdwg.mxu0
    %v283 = vld [vmem:[#allocation8] sm:$0xff]
    %v284 = vld [vmem:[#allocation8 + $0x8] sm:$0xff]
    %v285 = vld [vmem:[#allocation8 + $0x10] sm:$0xff]
    %v286 = vld [vmem:[#allocation8 + $0x18] sm:$0xff]
    %v288 = vsel %vm104, %v93, 0
    %v291 = vsel %vm104, %v94, 0
    %v294 = vsel %vm104, %v95, 0
    %296 = vmatprep.subr.mxu0 0.0
    %297 = vmatpush1.msra.mxu0 %v283
    %298 = vmatprep.subr.mxu0 0.0
    %299 = vmatpush1.msra.mxu0 %v284
    %300 = vmatprep.subr.mxu0 0.0
    %301 = vmatpush1.msra.mxu0 %v285
    %302 = vmatprep.subr.mxu0 0.0
    %303 = vmatpush1.msra.mxu0 %v286
    %304 = vmatprep.subr.mxu0 0.0
    %305 = vmatpush1.msra.mxu0 0.0
    %306 = vmatprep.subr.mxu0 0.0
    %307 = vmatpush1.msra.mxu0 0.0
    %308 = vmatprep.subr.mxu0 0.0
    %309 = vmatpush1.msra.mxu0 0.0
    %310 = vmatprep.subr.mxu0 0.0
    %311 = vmatpush1.msra.mxu0 0.0
    %312 = vmatprep.subr.mxu0 0.0
    %313 = vmatpush1.msra.mxu0 0.0
    %314 = vmatprep.subr.mxu0 0.0
    %315 = vmatpush1.msra.mxu0 0.0
    %316 = vmatprep.subr.mxu0 0.0
    %317 = vmatpush1.msra.mxu0 0.0
    %318 = vmatprep.subr.mxu0 0.0
    %319 = vmatpush1.msra.mxu0 0.0
    %320 = vmatprep.subr.mxu0 0.0
    %321 = vmatpush1.msra.mxu0 0.0
    %322 = vmatprep.subr.mxu0 0.0
    %323 = vmatpush1.msra.mxu0 0.0
    %324 = vmatprep.subr.mxu0 0.0
    %325 = vmatpush1.msra.mxu0 0.0
    %326 = vmatprep.subr.mxu0 0.0
    %327 = vmatpush1.msra.mxu0 0.0
    %328 = vmatprep.subr.mxu0 0.0
    %329 = vmatpush1.msra.mxu0 0.0
    %330 = vmatprep.subr.mxu0 0.0
    %331 = vmatpush1.msra.mxu0 0.0
    %332 = vmatprep.subr.mxu0 0.0
    %333 = vmatpush1.msra.mxu0 0.0
    %334 = vmatprep.subr.mxu0 0.0
    %335 = vmatpush1.msra.mxu0 0.0
    %336 = vmatprep.subr.mxu0 0.0
    %337 = vmatpush1.msra.mxu0 0.0
    %338 = vmatprep.subr.mxu0 0.0
    %339 = vmatpush1.msra.mxu0 0.0
    %340 = vmatprep.subr.mxu0 0.0
    %341 = vmatpush1.msra.mxu0 0.0
    %342 = vmatprep.subr.mxu0 0.0
    %343 = vmatpush1.msra.mxu0 0.0
    %344 = vmatprep.subr.mxu0 0.0
    %345 = vmatpush1.msra.mxu0 0.0
    %346 = vmatprep.subr.mxu0 0.0
    %347 = vmatpush1.msra.mxu0 0.0
    %348 = vmatprep.subr.mxu0 0.0
    %349 = vmatpush1.msra.mxu0 0.0
    %350 = vmatprep.subr.mxu0 0.0
    %351 = vmatpush1.msra.mxu0 0.0
    %352 = vmatprep.subr.mxu0 0.0
    %353 = vmatpush1.msra.mxu0 0.0
    %354 = vmatprep.subr.mxu0 0.0
    %355 = vmatpush1.msra.mxu0 0.0
    %356 = vmatprep.subr.mxu0 0.0
    %357 = vmatpush1.msra.mxu0 0.0
    %358 = vmatprep.subr.mxu0 0.0
    %359 = vmatpush1.msra.mxu0 0.0
    %360 = vmatprep.mubr.f32.mxu0 0.0
    %361 = vmatmul.mubr.f32.gmra.mrb[0].mxu0 %v288
    %v362 = vpop.f32.mrb[0].mxu0
    %v363 = vadd.f32 0.0, %v362
    %v364 = vpop.f32.mrb[0].mxu0
    %365 = vmatprep.mubr.f32.mxu0 0.0
    %366 = vmatmul.mubr.f32.gmra.mrb[0].mxu0 %v291
    %v367 = vpop.f32.mrb[0].mxu0
    %v368 = vadd.f32 0.0, %v367
    %v369 = vpop.f32.mrb[0].mxu0
    %370 = vmatprep.mubr.f32.mxu0 0.0
    %371 = vmatmul.mubr.f32.gmra.mrb[0].mxu0 %v294
    %v372 = vpop.f32.mrb[0].mxu0
    %v373 = vadd.f32 0.0, %v372
    %v374 = vpop.f32.mrb[0].mxu0
    %375 = vdwg.mxu0
    %v376 = vadd.f32 %v270, %v363
    %v377 = vadd.f32 %v275, %v368
    %v378 = vadd.f32 %v280, %v373
    %v379 = vld [vmem:[%s6] sm:$0x1]
    %v381 = vlaneseq
    %v382 = vshrl.u32 %v381, 7
    %v383 = vsub.s32 0, %v382
    %v384 = vrot.slane %v379, %v383
    %v386 = vadd.f32 %v376, %v384
    %v387 = vadd.f32 %v377, %v384
    %v388 = vadd.f32 %v378, %v384
    %v389 = vtanh.pop %v386
    %v390 = vtanh.pop %v387
    %v391 = vtanh.pop %v388
    %v392 = vld [vmem:[%s7] sm:$0xff]
    %v393 = vld [vmem:[%s7 + $0x8] sm:$0xff]
    %v394 = vld [vmem:[%s7 + $0x10] sm:$0xff]
    %v395 = vld [vmem:[%s7 + $0x18] sm:$0xff]
    %v396 = vld [vmem:[%s7 + $0x20] sm:$0xff]
    %v397 = vld [vmem:[%s7 + $0x28] sm:$0xff]
    %vm398 = vcmask 392192
    %v400 = vsel %vm398, %v389, 0
    %v403 = vsel %vm398, %v390, 0
    %v406 = vsel %vm398, %v391, 0
    %408 = vmatprep.subr.mxu0 0.0
    %409 = vmatpush1.msra.mxu0 %v392
    %410 = vmatprep.subr.mxu0 0.0
    %411 = vmatpush1.msra.mxu0 %v393
    %412 = vmatprep.subr.mxu0 0.0
    %413 = vmatpush1.msra.mxu0 %v394
    %414 = vmatprep.subr.mxu0 0.0
    %415 = vmatpush1.msra.mxu0 %v395
    %416 = vmatprep.subr.mxu0 0.0
    %417 = vmatpush1.msra.mxu0 %v396
    %418 = vmatprep.subr.mxu0 0.0
    %419 = vmatpush1.msra.mxu0 %v397
    %420 = vmatprep.subr.mxu0 0.0
    %421 = vmatpush1.msra.mxu0 0.0
    %422 = vmatprep.subr.mxu0 0.0
    %423 = vmatpush1.msra.mxu0 0.0
    %424 = vmatprep.subr.mxu0 0.0
    %425 = vmatpush1.msra.mxu0 0.0
    %426 = vmatprep.subr.mxu0 0.0
    %427 = vmatpush1.msra.mxu0 0.0
    %428 = vmatprep.subr.mxu0 0.0
    %429 = vmatpush1.msra.mxu0 0.0
    %430 = vmatprep.subr.mxu0 0.0
    %431 = vmatpush1.msra.mxu0 0.0
    %432 = vmatprep.subr.mxu0 0.0
    %433 = vmatpush1.msra.mxu0 0.0
    %434 = vmatprep.subr.mxu0 0.0
    %435 = vmatpush1.msra.mxu0 0.0
    %436 = vmatprep.subr.mxu0 0.0
    %437 = vmatpush1.msra.mxu0 0.0
    %438 = vmatprep.subr.mxu0 0.0
    %439 = vmatpush1.msra.mxu0 0.0
    %440 = vmatprep.subr.mxu0 0.0
    %441 = vmatpush1.msra.mxu0 0.0
    %442 = vmatprep.subr.mxu0 0.0
    %443 = vmatpush1.msra.mxu0 0.0
    %444 = vmatprep.subr.mxu0 0.0
    %445 = vmatpush1.msra.mxu0 0.0
    %446 = vmatprep.subr.mxu0 0.0
    %447 = vmatpush1.msra.mxu0 0.0
    %448 = vmatprep.subr.mxu0 0.0
    %449 = vmatpush1.msra.mxu0 0.0
    %450 = vmatprep.subr.mxu0 0.0
    %451 = vmatpush1.msra.mxu0 0.0
    %452 = vmatprep.subr.mxu0 0.0
    %453 = vmatpush1.msra.mxu0 0.0
    %454 = vmatprep.subr.mxu0 0.0
    %455 = vmatpush1.msra.mxu0 0.0
    %456 = vmatprep.subr.mxu0 0.0
    %457 = vmatpush1.msra.mxu0 0.0
    %458 = vmatprep.subr.mxu0 0.0
    %459 = vmatpush1.msra.mxu0 0.0
    %460 = vmatprep.subr.mxu0 0.0
    %461 = vmatpush1.msra.mxu0 0.0
    %462 = vmatprep.subr.mxu0 0.0
    %463 = vmatpush1.msra.mxu0 0.0
    %464 = vmatprep.subr.mxu0 0.0
    %465 = vmatpush1.msra.mxu0 0.0
    %466 = vmatprep.subr.mxu0 0.0
    %467 = vmatpush1.msra.mxu0 0.0
    %468 = vmatprep.subr.mxu0 0.0
    %469 = vmatpush1.msra.mxu0 0.0
    %470 = vmatprep.subr.mxu0 0.0
    %471 = vmatpush1.msra.mxu0 0.0
    %472 = vmatprep.mubr.f32.mxu0 0.0
    %473 = vmatmul.mubr.f32.gmra.mrb[0].mxu0 %v400
    %v474 = vpop.f32.mrb[0].mxu0
    %v475 = vadd.f32 0.0, %v474
    %v476 = vpop.f32.mrb[0].mxu0
    %477 = vmatprep.mubr.f32.mxu0 0.0
    %478 = vmatmul.mubr.f32.gmra.mrb[0].mxu0 %v403
    %v479 = vpop.f32.mrb[0].mxu0
    %v480 = vadd.f32 0.0, %v479
    %v481 = vpop.f32.mrb[0].mxu0
    %482 = vmatprep.mubr.f32.mxu0 0.0
    %483 = vmatmul.mubr.f32.gmra.mrb[0].mxu0 %v406
    %v484 = vpop.f32.mrb[0].mxu0
    %v485 = vadd.f32 0.0, %v484
    %v486 = vpop.f32.mrb[0].mxu0
    %487 = vdwg.mxu0
    %vm488 = vcmask 23552
    %v489 = vsel %vm488, %v475, -inf
    %490 = vmax.xlane.f32.xlu0 %v489
    %v491 = vpop.xlane.xlu0 %490
    %v492 = vsel %vm488, %v480, -inf
    %493 = vmax.xlane.f32.xlu0 %v492
    %v494 = vpop.xlane.xlu0 %493
    %vm495 = vcmask 19456
    %v496 = vsel %vm495, %v485, -inf
    %497 = vmax.xlane.f32.xlu0 %v496
    %v498 = vpop.xlane.xlu0 %497
    %v499 = vsub.f32 %v475, %v491
    %v500 = vsub.f32 %v480, %v494
    %v501 = vsub.f32 %v485, %v498
    %v502 = vmul.f32 %v499, 1.442695
    %v503 = vpow.pop %v502
    %v504 = vmul.f32 %v500, 1.442695
    %v505 = vpow.pop %v504
    %v506 = vmul.f32 %v501, 1.442695
    %v507 = vpow.pop %v506
    %v508 = vsel %vm488, %v503, 0.0
    %509 = vadd.xlane.f32.xlu0 %v508
    %v510 = vpop.xlane.xlu0 %509
    %v511 = vsel %vm488, %v505, 0.0
    %512 = vadd.xlane.f32.xlu0 %v511
    %v513 = vpop.xlane.xlu0 %512
    %v514 = vsel %vm495, %v507, 0.0
    %515 = vadd.xlane.f32.xlu0 %v514
    %v516 = vpop.xlane.xlu0 %515
    %v517 = vrcp.pop %v510
    %v518 = vmul.f32 %v503, %v517
    %v519 = vrcp.pop %v513
    %v520 = vmul.f32 %v505, %v519
    %v521 = vrcp.pop %v516
    %v522 = vmul.f32 %v507, %v521
    %523 = vst.msk [vmem:[%s9] sm:$0xff] %vm488, %v518
    %524 = vst.msk [vmem:[%s9 + $0x8] sm:$0xff] %vm488, %v520
    %525 = vst.msk [vmem:[%s9 + $0x10] sm:$0xf] %vm495, %v522
    %527 = vset.pattern.permute.xlu0 0
    %528 = vperm.xlu0 %527, %v518
    %v529 = vpop.permute.xlu0 %528
    %532 = vset.pattern.permute.xlu0 0
    %533 = vperm.xlu0 %532, %v520
    %v534 = vpop.permute.xlu0 %533
    %537 = vset.pattern.permute.xlu0 0
    %538 = vperm.xlu0 %537, %v522
    %v539 = vpop.permute.xlu0 %538
    %v541 = vmul.f32 %v529, %v87
    %v542 = vmul.f32 %v534, %v88
    %v543 = vmul.f32 %v539, %v89
    %544 = vset.pattern.permute.xlu0 1
    %545 = vperm.xlu0 %544, %v518
    %v546 = vpop.permute.xlu0 %545
    %548 = vset.pattern.permute.xlu0 1
    %549 = vperm.xlu0 %548, %v520
    %v550 = vpop.permute.xlu0 %549
    %552 = vset.pattern.permute.xlu0 1
    %553 = vperm.xlu0 %552, %v522
    %v554 = vpop.permute.xlu0 %553
    %v556 = vmul.f32 %v546, %v90
    %v557 = vmul.f32 %v550, %v91
    %v558 = vmul.f32 %v554, %v92
    %v559 = vadd.f32 %v541, %v556
    %v560 = vadd.f32 %v542, %v557
    %v561 = vadd.f32 %v543, %v558
    %562 = vset.pattern.permute.xlu0 2
    %563 = vperm.xlu0 %562, %v518
    %v564 = vpop.permute.xlu0 %563
    %566 = vset.pattern.permute.xlu0 2
    %567 = vperm.xlu0 %566, %v520
    %v568 = vpop.permute.xlu0 %567
    %570 = vset.pattern.permute.xlu0 2
    %571 = vperm.xlu0 %570, %v522
    %v572 = vpop.permute.xlu0 %571
    %v574 = vmul.f32 %v564, %v93
    %v575 = vmul.f32 %v568, %v94
    %v576 = vmul.f32 %v572, %v95
    %v577 = vadd.f32 %v559, %v574
    %v578 = vadd.f32 %v560, %v575
    %v579 = vadd.f32 %v561, %v576
    %580 = vst.msk [vmem:[#allocation10] sm:$0xff] %vm104, %v577
    %581 = vst.msk [vmem:[#allocation10 + $0x8] sm:$0xff] %vm104, %v578
    %vm582 = vcmask 257024
    %583 = vst.msk [vmem:[#allocation10 + $0x10] sm:$0xf] %vm582, %v579
    // Predicated region
    $region50: #{tpu_custom_call.1} parent=1 // pred_check
      _
    $region51: #{tpu_custom_call.1} parent=1 // pred_check_branch
      %585 = sbr.rel (0) target = $region53
    $region52: #{tpu_custom_call.1} parent=1 // pred_region
      %s587 = ssub.s32 384, 384
      %588 = vsyncadd [#allocation4], %s587
      %s589 = sshll.u32 [#allocation10], 4
      %s590 = int_to_ptr.vmem [resolvable:$true] %s589
      %595 = dma.vmem_to_hbm [thread:$0]  %s590, 384, %s8, [#allocation4], 128, 128, 8
    $region53: #{tpu_custom_call.1} parent=1 // pred_fallthru
      _
    // Predicated region
    $region54: #{tpu_custom_call.1} parent=1 // pred_check
      _
    $region55: #{tpu_custom_call.1} parent=1 // pred_check_branch
      %597 = sbr.rel (0) target = $region57
    $region56: #{tpu_custom_call.1} parent=1 // pred_region
      _
    $region57: #{tpu_custom_call.1} parent=1 // pred_fallthru
      _
    // Predicated region
    $region58: #{tpu_custom_call.1} parent=1 // pred_check
      _
    $region59: #{tpu_custom_call.1} parent=1 // pred_check_branch
      %599 = sbr.rel (0) target = $region61
    $region60: #{tpu_custom_call.1} parent=1 // pred_region
      %600 = dma.done [#allocation4], 384
    $region61: #{tpu_custom_call.1} parent=1 // pred_fallthru
      _
    // Predicated region
    $region62: #{tpu_custom_call.1} parent=1 // pred_check
      _
    $region63: #{tpu_custom_call.1} parent=1 // pred_check_branch
      %602 = sbr.rel (0) target = $region65
    $region64: #{tpu_custom_call.1} parent=1 // pred_region
      _
    $region65: #{tpu_custom_call.1} parent=1 // pred_fallthru
      _
    %603 = vsyncpa [#allocation3], 1
    %604 = vsyncpa [#allocation6], 1
    %605 = vsyncpa [#allocation9], 1
    %606 = vsyncpa [#allocation4], 1

</llo_original>
